<compile_context>
chip_gen: v7x
topology: tpu7x:2x2x1
jax: 0.10.0
libtpu: 0.0.40
codegen_flags: <defaults>
</compile_context>

<pallas_src>
import math

import jax
import jax.numpy as jnp
from jax import lax
from jax.experimental import pallas as pl
from jax.experimental.pallas import tpu as pltpu

_NEG = -1e30  # finite "minus infinity" used for masked lanes


def _make_ea_kernel(n_valid, n_pad, bt, n_chunk, approx_recip=True):
    """Build the kernel for one (bt, C, n_pad) batch-block with fused weights."""
    n_chunks = n_pad // n_chunk
    ragged = n_valid < n_pad

    def recip(v):
        return pl.reciprocal(v, approx=True) if approx_recip else 1.0 / v

    def kernel(x_ref, wf_in_ref, wf_out_ref, shift_ref, o_ref, m_sc, l_sc):
        wf_in = wf_in_ref[...]                       # (K, C)  W_lin0 @ W_conv1
        wf_out = wf_out_ref[...]                     # (C, K)  bn_scale*(W_conv2 @ W_lin1)
        shift = shift_ref[...].astype(jnp.float32)   # (C, 1)  bn_shift

        # Hoisted once (only needed on the ragged-N path): lane index in chunk.
        lane = (jax.lax.broadcasted_iota(jnp.int32, (1, n_chunk), 1)
                if ragged else None)

        def logits_chunk(bi, off):
            # fused conv1 + linear_0 (conv1 bias cancels under the softmax)
            xc = x_ref[bi, :, pl.ds(off, n_chunk)]                  # (C, n_chunk)
            lg = jnp.dot(wf_in, xc.astype(wf_in.dtype),
                         preferred_element_type=jnp.float32)        # (K, n_chunk)
            if ragged:
                lg = jnp.where(lane + off < n_valid, lg, _NEG)
            return lg

        def finish_chunk(bi, off, lg, m, inv_l):
            # softmax finalize, double-normalization, fused output matmul + BN
            attn = jnp.exp(lg - m) * inv_l                           # (K, n_chunk)
            col = jnp.sum(attn, axis=0, keepdims=True)               # (1, n_chunk)
            attn = attn * recip(col + 1e-9)
            out = jnp.dot(wf_out, attn.astype(wf_out.dtype),
                          preferred_element_type=jnp.float32) + shift
            o_ref[bi, :, pl.ds(off, n_chunk)] = out.astype(o_ref.dtype)

        def one_batch(bi):
            if n_chunks == 1:
                # Small-N fast path: single chunk, logits computed once.
                lg = logits_chunk(bi, 0)
                m = jnp.max(lg, axis=-1, keepdims=True)
                attn = jnp.exp(lg - m)
                attn = attn * recip(jnp.sum(attn, axis=-1, keepdims=True))
                col = jnp.sum(attn, axis=0, keepdims=True)
                attn = attn * recip(col + 1e-9)
                out = jnp.dot(wf_out, attn.astype(wf_out.dtype),
                              preferred_element_type=jnp.float32) + shift
                o_ref[bi] = out.astype(o_ref.dtype)
                return

            # Pass 1: online row max / normalizer over the N chunks; only the
            # (K, 1) running stats stay live between chunks.
            m_sc[...] = jnp.full_like(m_sc, _NEG)
            l_sc[...] = jnp.zeros_like(l_sc)

            def p1(ci, carry):
                off = pl.multiple_of(ci * n_chunk, 128)
                lg = logits_chunk(bi, off)
                m_old = m_sc[...]
                m_new = jnp.maximum(m_old, jnp.max(lg, axis=-1, keepdims=True))
                l_sc[...] = (l_sc[...] * jnp.exp(m_old - m_new)
                             + jnp.sum(jnp.exp(lg - m_new), axis=-1, keepdims=True))
                m_sc[...] = m_new
                return carry

            lax.fori_loop(0, n_chunks, p1, 0)
            m = m_sc[...]
            inv_l = recip(l_sc[...])

            # Pass 2: recompute the cheap logits, normalize, matmul, store chunk.
            def p2(ci, carry):
                off = pl.multiple_of(ci * n_chunk, 128)
                finish_chunk(bi, off, logits_chunk(bi, off), m, inv_l)
                return carry

            lax.fori_loop(0, n_chunks, p2, 0)

        if bt == 1:
            one_batch(0)
        else:
            def batch_body(bi, carry):
                one_batch(bi)
                return carry
            lax.fori_loop(0, bt, batch_body, 0)

    return kernel


def external_attention(x_nchw, params, *, batch_block=1, n_chunk=1024,
                       matmul_dtype=None, approx_recip=True):
    """Forward pass of External_attention.  x: (B, C, H, W)."""
    b, c, h, w = x_nchw.shape
    n = h * w
    k = params["w_lin0"].shape[0]
    out_dtype = x_nchw.dtype

    # ---- algebraic fusion of the 1x1-conv chain (pure linear algebra) -------
    # conv1's bias is dropped: W_lin0 @ b_conv1 adds the same constant to every
    # spatial position of a softmax row, so it cancels exactly in the softmax.
    f32 = jnp.float32
    wf_in = params["w_lin0"].astype(f32) @ params["w_conv1"].astype(f32)      # (K, C)
    wf_out = params["bn_scale"].astype(f32) * (
        params["w_conv2"].astype(f32) @ params["w_lin1"].astype(f32))          # (C, K)
    shift = params["bn_shift"].astype(f32)                                     # (C, 1)

    if matmul_dtype is not None:
        # Only the tiny fused weights are cast here; x is cast per chunk inside
        # the kernel (no extra HBM round trip), and the output dtype stays
        # pinned to the caller's dtype (accumulation is f32 throughout).
        wf_in = wf_in.astype(matmul_dtype)
        wf_out = wf_out.astype(matmul_dtype)

    # ---- lane-dense chunking of the spatial dim ------------------------------
    # No jnp.pad / output slice: the x / out blocks are simply wider than the
    # array (partial last block); garbage lanes are masked before the softmax
    # and out-of-range output lanes are dropped on writeback.
    n_chunk = max(128, min(int(n_chunk), 128 * pl.cdiv(n, 128)))
    n_chunk = 128 * pl.cdiv(n_chunk, 128)
    n_pad = n_chunk * pl.cdiv(n, n_chunk)

    x = x_nchw.reshape(b, c, n)

    bt = batch_block
    assert b % bt == 0, "batch_block must divide the batch size"
    grid = (b // bt,)   # keep >= 2 grid steps on v7x (2 TensorCores)

    # VMEM limit: double-buffered in/out blocks + weights + headroom, capped at
    # 75% of this generation's physical VMEM.
    blk_bytes = bt * c * n_pad * x.dtype.itemsize
    w_bytes = (wf_in.size * wf_in.dtype.itemsize
               + wf_out.size * wf_out.dtype.itemsize + shift.size * 4)
    est = 2 * 2 * blk_bytes + 2 * w_bytes + (4 << 20)
    try:
        vmem_cap = pltpu.get_tpu_info().vmem_capacity_bytes
    except Exception:
        vmem_cap = 64 << 20   # conservative fallback (v7x per-TC physical)
    vmem_limit = int(min(max(est, 32 << 20), int(0.75 * vmem_cap)))

    full = lambda shape: pl.BlockSpec(shape, lambda i: (0,) * len(shape))

    # TODO(synk): grid-level N tiling (an "arbitrary" N grid axis with the same
    # two-pass softmax) for H*W so large that one (C, n_pad) x block no longer
    # fits in VMEM; the in-kernel chunking already bounds the (K, N) temporaries.
    out = pl.pallas_call(
        _make_ea_kernel(n, n_pad, bt, n_chunk, approx_recip),
        out_shape=jax.ShapeDtypeStruct((b, c, n), out_dtype),
        grid_spec=pltpu.PrefetchScalarGridSpec(
            num_scalar_prefetch=0,
            grid=grid,
            in_specs=[
                pl.BlockSpec((bt, c, n_pad), lambda i: (i, 0, 0)),  # x
                full((k, c)),   # fused input weight  (resident across steps)
                full((c, k)),   # fused output weight (BN scale folded)
                full((c, 1)),   # BN shift
            ],
            out_specs=pl.BlockSpec((bt, c, n_pad), lambda i: (i, 0, 0)),
            scratch_shapes=[pltpu.VMEM((k, 1), jnp.float32),   # running max
                            pltpu.VMEM((k, 1), jnp.float32)],  # running sum
        ),
        compiler_params=pltpu.CompilerParams(
            dimension_semantics=("parallel",),
            vmem_limit_bytes=vmem_limit,
        ),
    )(x, wf_in, wf_out, shift)

    return out.reshape(b, c, h, w)


def init_params(key, c, k=32, dtype=jnp.float32):
    k1, k2, k3, k4 = jax.random.split(key, 4)
    # Conv2d init from the module: N(0, sqrt(2 / (kh*kw*out_channels))), kh=kw=1.
    w_conv1 = jax.random.normal(k1, (c, c), dtype) * math.sqrt(2.0 / c)
    # Conv2d bias default init (uniform in +-1/sqrt(fan_in)), deterministic here.
    b_conv1 = jax.random.uniform(k2, (c, 1), dtype,
                                 minval=-1.0 / math.sqrt(c),
                                 maxval=1.0 / math.sqrt(c))
    # linear_0 / linear_1 share storage via permute(1,0,2); the last in-place
    # normal_ (std sqrt(2/c) from linear_1's out_channels) wins, so they are a
    # tied transpose pair with std sqrt(2/c).
    w_lin0 = jax.random.normal(k3, (k, c), dtype) * math.sqrt(2.0 / c)  # (K, C)
    w_lin1 = w_lin0.T                                                   # (C, K)
    w_conv2 = jax.random.normal(k4, (c, c), dtype) * math.sqrt(2.0 / c)
    # BatchNorm2d: gamma=1, beta=0, running_mean=0, running_var=1, eps=1e-5,
    # eval mode, folded into per-channel scale/shift.
    # TODO(synk): training-mode BN (batch statistics) not implemented.
    eps = 1e-5
    bn_scale = jnp.full((c, 1), 1.0 / math.sqrt(1.0 + eps), dtype)
    bn_shift = jnp.zeros((c, 1), dtype)
    return dict(w_conv1=w_conv1, b_conv1=b_conv1, w_lin0=w_lin0, w_lin1=w_lin1,
                w_conv2=w_conv2, bn_scale=bn_scale, bn_shift=bn_shift)


def _reference(x_nchw, p):
    # Pure-JAX reference matching the original (unfused) module semantics.
    b, c, h, w = x_nchw.shape
    x = x_nchw.reshape(b, c, h * w)
    y = jnp.einsum("oc,bcn->bon", p["w_conv1"], x) + p["b_conv1"][None]
    attn = jnp.einsum("kc,bcn->bkn", p["w_lin0"], y)
    attn = jax.nn.softmax(attn, axis=-1)
    attn = attn / (1e-9 + attn.sum(axis=1, keepdims=True))
    z = jnp.einsum("ck,bkn->bcn", p["w_lin1"], attn)
    out = jnp.einsum("oc,bcn->bon", p["w_conv2"], z)
    out = out * p["bn_scale"][None] + p["bn_shift"][None]
    return out.reshape(b, c, h, w)


if __name__ == "__main__":
    key = jax.random.PRNGKey(0)
    kx, kp, kx2, kx3 = jax.random.split(key, 4)

    B, C, H, W = 2, 4, 16, 16
    x = jax.random.normal(kx, (B, C, H, W), jnp.float32)
    params = init_params(kp, C, k=32)

    out = jax.block_until_ready(external_attention(x, params))
    ref = _reference(x, params)
    assert out.shape == (B, C, H, W)
    assert jnp.allclose(out, ref, atol=5e-3, rtol=5e-3), "mismatch vs reference"

    # Ragged H*W (not a multiple of 128): exercises the in-kernel lane mask and
    # the partial-block (no pad / no slice) path.
    x2 = jax.random.normal(kx2, (B, C, 14, 14), jnp.float32)
    out2 = jax.block_until_ready(external_attention(x2, params))
    ref2 = _reference(x2, params)
    assert out2.shape == (B, C, 14, 14)
    assert jnp.allclose(out2, ref2, atol=5e-3, rtol=5e-3), "mismatch (ragged N)"

    # Chunked two-pass softmax + batch_block > 1 (fori_loop over the batch)
    # while keeping the grid at >= 2 steps.
    x3 = jax.random.normal(kx3, (4, C, 20, 20), jnp.float32)
    out3 = jax.block_until_ready(
        external_attention(x3, params, batch_block=2, n_chunk=128))
    ref3 = _reference(x3, params)
    assert out3.shape == (4, C, 20, 20)
    assert jnp.allclose(out3, ref3, atol=5e-3, rtol=5e-3), "mismatch (chunked N)"

    print("KERNEL_OK")
</pallas_src>

<mosaic_0001>
module attributes {stable_mosaic.version = 11 : i64} {
  func.func @kernel(%arg0: i32, %arg1: memref<1x4x256xf32, #tpu.memory_space<vmem>>, %arg2: memref<32x4xf32, #tpu.memory_space<vmem>>, %arg3: memref<4x32xf32, #tpu.memory_space<vmem>>, %arg4: memref<4x1xf32, #tpu.memory_space<vmem>>, %arg5: memref<1x4x256xf32, #tpu.memory_space<vmem>>, %arg6: memref<32x1xf32, #tpu.memory_space<vmem>>, %arg7: memref<32x1xf32, #tpu.memory_space<vmem>>) attributes {dimension_semantics = [#tpu.dimension_semantics<parallel>], iteration_bounds = array<i64: 2>, scalar_prefetch = 0 : i64, scratch_operands = 2 : i64, tpu.core_type = #tpu.core_type<tc>, window_params = [{transform_indices = @transform_0, window_bounds = array<i64: 1, 4, 256>}, {pipeline_mode = #tpu.pipeline_mode<synchronous>, transform_indices = @transform_1, window_bounds = array<i64: 32, 4>}, {pipeline_mode = #tpu.pipeline_mode<synchronous>, transform_indices = @transform_2, window_bounds = array<i64: 4, 32>}, {pipeline_mode = #tpu.pipeline_mode<synchronous>, transform_indices = @transform_3, window_bounds = array<i64: 4, 1>}, {transform_indices = @transform_4, window_bounds = array<i64: 1, 4, 256>}]} {
    %c0 = arith.constant 0 : index
    %c0_0 = arith.constant 0 : index
    %0 = vector.load %arg2[%c0, %c0_0] : memref<32x4xf32, #tpu.memory_space<vmem>>, vector<32x4xf32>
    %c0_1 = arith.constant 0 : index
    %c0_2 = arith.constant 0 : index
    %1 = vector.load %arg3[%c0_1, %c0_2] : memref<4x32xf32, #tpu.memory_space<vmem>>, vector<4x32xf32>
    %c0_3 = arith.constant 0 : index
    %c0_4 = arith.constant 0 : index
    %2 = vector.load %arg4[%c0_3, %c0_4] : memref<4x1xf32, #tpu.memory_space<vmem>>, vector<4x1xf32>
    %c0_5 = arith.constant 0 : index
    %c0_6 = arith.constant 0 : index
    %c0_7 = arith.constant 0 : index
    %3 = vector.load %arg1[%c0_5, %c0_6, %c0_7] : memref<1x4x256xf32, #tpu.memory_space<vmem>>, vector<1x4x256xf32>
    %4 = vector.shape_cast %3 : vector<1x4x256xf32> to vector<4x256xf32>
    %cst = arith.constant dense<0.000000e+00> : vector<32x256xf32>
    %5 = tpu.matmul %0, %4, %cst {dimension_numbers = #tpu.dot_dimension_numbers<[1], [0], [0], [1], [0, 0, 1, 1], [], []>} : vector<32x4xf32>, vector<4x256xf32>, vector<32x256xf32> -> vector<32x256xf32>
    %cst_8 = arith.constant dense<0xFF800000> : vector<32xf32>
    %6 = vector.multi_reduction <maximumf>, %5, %cst_8 [1] : vector<32x256xf32> to vector<32xf32>
    %7 = vector.shape_cast %6 : vector<32xf32> to vector<32x1xf32>
    %8 = vector.broadcast %7 : vector<32x1xf32> to vector<32x256xf32>
    %9 = arith.subf %5, %8 : vector<32x256xf32>
    %10 = math.exp %9 : vector<32x256xf32>
    %cst_9 = arith.constant dense<0.000000e+00> : vector<32xf32>
    %11 = vector.multi_reduction <add>, %10, %cst_9 [1] : vector<32x256xf32> to vector<32xf32>
    %12 = vector.shape_cast %11 : vector<32xf32> to vector<32x1xf32>
    %13 = tpu.reciprocal %12 {approx = true} : vector<32x1xf32> -> vector<32x1xf32>
    %14 = vector.broadcast %13 : vector<32x1xf32> to vector<32x256xf32>
    %15 = arith.mulf %10, %14 : vector<32x256xf32>
    %cst_10 = arith.constant dense<0.000000e+00> : vector<256xf32>
    %16 = vector.multi_reduction <add>, %15, %cst_10 [0] : vector<32x256xf32> to vector<256xf32>
    %17 = vector.shape_cast %16 : vector<256xf32> to vector<1x256xf32>
    %cst_11 = arith.constant 9.99999971E-10 : f32
    %18 = vector.broadcast %cst_11 : f32 to vector<1x256xf32>
    %19 = arith.addf %17, %18 : vector<1x256xf32>
    %20 = tpu.reciprocal %19 {approx = true} : vector<1x256xf32> -> vector<1x256xf32>
    %21 = vector.broadcast %20 : vector<1x256xf32> to vector<32x256xf32>
    %22 = arith.mulf %15, %21 : vector<32x256xf32>
    %cst_12 = arith.constant dense<0.000000e+00> : vector<4x256xf32>
    %23 = tpu.matmul %1, %22, %cst_12 {dimension_numbers = #tpu.dot_dimension_numbers<[1], [0], [0], [1], [0, 0, 1, 1], [], []>} : vector<4x32xf32>, vector<32x256xf32>, vector<4x256xf32> -> vector<4x256xf32>
    %24 = vector.broadcast %2 : vector<4x1xf32> to vector<4x256xf32>
    %25 = arith.addf %23, %24 : vector<4x256xf32>
    %c0_13 = arith.constant 0 : index
    %c0_14 = arith.constant 0 : index
    %c0_15 = arith.constant 0 : index
    %26 = vector.load %arg5[%c0_13, %c0_14, %c0_15] : memref<1x4x256xf32, #tpu.memory_space<vmem>>, vector<1x4x256xf32>
    %27 = vector.shape_cast %26 : vector<1x4x256xf32> to vector<4x256xf32>
    %28 = vector.shape_cast %25 : vector<4x256xf32> to vector<1x4x256xf32>
    tpu.vector_store %arg5[%c0_13, %c0_14, %c0_15], %28 {strides = array<i32>} : memref<1x4x256xf32, #tpu.memory_space<vmem>>, vector<1x4x256xf32>,
    return
  }
  func.func @transform_0(%arg0: i32) -> (i32, i32, i32) {
    %c0_i32 = arith.constant 0 : i32
    %c0_i32_0 = arith.constant 0 : i32
    %c0_i32_1 = arith.constant 0 : i32
    return %arg0, %c0_i32, %c0_i32_0 : i32, i32, i32
  }
  func.func @transform_1(%arg0: i32) -> (i32, i32) {
    %c0_i32 = arith.constant 0 : i32
    %c0_i32_0 = arith.constant 0 : i32
    %c0_i32_1 = arith.constant 0 : i32
    return %c0_i32, %c0_i32_0 : i32, i32
  }
  func.func @transform_2(%arg0: i32) -> (i32, i32) {
    %c0_i32 = arith.constant 0 : i32
    %c0_i32_0 = arith.constant 0 : i32
    %c0_i32_1 = arith.constant 0 : i32
    return %c0_i32, %c0_i32_0 : i32, i32
  }
  func.func @transform_3(%arg0: i32) -> (i32, i32) {
    %c0_i32 = arith.constant 0 : i32
    %c0_i32_0 = arith.constant 0 : i32
    %c0_i32_1 = arith.constant 0 : i32
    return %c0_i32, %c0_i32_0 : i32, i32
  }
  func.func @transform_4(%arg0: i32) -> (i32, i32, i32) {
    %c0_i32 = arith.constant 0 : i32
    %c0_i32_0 = arith.constant 0 : i32
    %c0_i32_1 = arith.constant 0 : i32
    return %arg0, %c0_i32, %c0_i32_0 : i32, i32, i32
  }
}

</mosaic_0001>

<llo_original>
// kernel: tpu_custom_call.1
$region0: #{tpu_custom_call.1}
  #allocation0 [shape = 'u32[]', space=smem, size = 0x4, offset = 0x4, fixed_abs, tag = 'smem constant byte address 0x4 - core index']
  #allocation1 [shape = 'u32[144,128]{1,0:T(1,128)}', space=vmem, size = 0x12000, scoped, tag = 'internal scratch']
  #allocation2 [shape = 'f32[32,1]{1,0:T(8,128)}', space=vmem, size = 0x4000, scoped, tag = 'scratch operand']
  #allocation3 [shape = 'f32[32,1]{1,0:T(8,128)}', space=vmem, size = 0x4000, scoped, tag = 'scratch operand']
  %s0 = inlined_call_operand.vmem [shape: f32[2,4,256], index: 0, kind: input, shape index: {}]
  %s1 = inlined_call_operand.vmem [shape: f32[32,4], index: 1, kind: input, shape index: {}]
  %s2 = inlined_call_operand.vmem [shape: f32[4,32], index: 2, kind: input, shape index: {}]
  %s3 = inlined_call_operand.vmem [shape: f32[4,1], index: 3, kind: input, shape index: {}]
  %s4 = inlined_call_operand.hbm [shape: f32[2,4,256], index: 4, kind: output, shape index: {}]
  %s5 = sld [smem:[#allocation0]]
  $region49: #{tpu_custom_call.1} parent=0
    _
  %s7 = ssub.s32 1, %s5
  %s8 = scalar_select 0, %s7, %s5
  $region1: #{tpu_custom_call.1} parent=0
    #allocation4 [shape = 'u8[8192]{0}', space=vmem, size = 0x2000, scoped, tag = 'output window, operand 0']
    #allocation5 [shape = 's32[2]{0}', space=sflag, size = 0x8, scoped, tag = 'scoped memory for tpu_custom_call.1']
    %9 = vsyncpa [#allocation5], 0
    %s10 = scalar_lea.sflag [#allocation5], 1
    %11 = vsyncpa %s10, 0
    loop: start=0, step=1, limit=4
    $region2: #{tpu_custom_call.1} parent=1 // loop_pre_header
      _
    $region3: #{tpu_custom_call.1} parent=1 // loop_header
      %s13 = sphi 0, %s17
      %p14 = scmp.ge.s32.totalorder %s13, 4
      %s23 = sphi 0, %s25
      %s26 = sphi 0, %s23
      %s27 = sphi 0, %s26
      %s43 = sphi 0, %s27
      %s47 = sphi 0, %s47
      %s49 = sphi 0, %s47
      %s50 = sphi 0, %s49
      %s64 = sphi 0, %s50
      %s68 = sphi 0, %s68
      %s70 = sphi 0, %s68
      %s71 = sphi 0, %s70
      %s85 = sphi 0, %s71
      %s89 = sphi 0, %s89
      %s91 = sphi 0, %s89
      %s92 = sphi 0, %s91
      %s106 = sphi 0, %s92
      %s112 = sphi 0, %s114
      %s115 = sphi 0, %s112
      %s116 = sphi 0, %s115
      %s132 = sphi 0, %s116
    $region4: #{tpu_custom_call.1} parent=1 // loop_header_branch
      %16 = sbr.rel (%p14) target = $region8
    $region5: #{tpu_custom_call.1} parent=1 // loop_body
      %s18 = ssub.s32 %s13, 1
      %s19 = ssub.s32 %s13, 2
      %s20 = sadd.s32 %s13, 1
      %s21 = ssub.s32 %s13, %s20
      %p22 = scmp.eq.s32.totalorder %s21, 0
      %s24 = sadd.s32 %s23, 1
      %s25 = scalar_select %p22, %s23, %s24
      %p28 = pneg %p22
      %p29 = scmp.eq.s32.totalorder %s13, 1
      %p30 = por %p28, %p29
      %p31 = scmp.ne.s32.totalorder %s23, %s26
      %p32 = scmp.eq.s32.totalorder %s13, 0
      %p33 = por %p31, %p32
      %p34 = scmp.ne.s32.totalorder %s23, %s26
      %p35 = scmp.eq.s32.totalorder %s18, 1
      %p36 = por %p34, %p35
      %p37 = scmp.ne.s32.totalorder %s26, %s27
      %p38 = scmp.eq.s32.totalorder %s18, 0
      %p39 = por %p37, %p38
      %p40 = scmp.ne.s32.totalorder %s26, %s27
      %p41 = scmp.eq.s32.totalorder %s19, 1
      %p42 = por %p40, %p41
      %p44 = scmp.ne.s32.totalorder %s27, %s43
      %p45 = scmp.eq.s32.totalorder %s19, 0
      %p46 = por %p44, %p45
      %s48 = sadd.s32 %s47, 1
      %p51 = scmp.eq.s32.totalorder %s13, 1
      %p52 = scmp.ne.s32.totalorder %s47, %s49
      %p53 = scmp.eq.s32.totalorder %s13, 0
      %p54 = por %p52, %p53
      %p55 = scmp.ne.s32.totalorder %s47, %s49
      %p56 = scmp.eq.s32.totalorder %s18, 1
      %p57 = por %p55, %p56
      %p58 = scmp.ne.s32.totalorder %s49, %s50
      %p59 = scmp.eq.s32.totalorder %s18, 0
      %p60 = por %p58, %p59
      %p61 = scmp.ne.s32.totalorder %s49, %s50
      %p62 = scmp.eq.s32.totalorder %s19, 1
      %p63 = por %p61, %p62
      %p65 = scmp.ne.s32.totalorder %s50, %s64
      %p66 = scmp.eq.s32.totalorder %s19, 0
      %p67 = por %p65, %p66
      %s69 = sadd.s32 %s68, 1
      %p72 = scmp.eq.s32.totalorder %s13, 1
      %p73 = scmp.ne.s32.totalorder %s68, %s70
      %p74 = scmp.eq.s32.totalorder %s13, 0
      %p75 = por %p73, %p74
      %p76 = scmp.ne.s32.totalorder %s68, %s70
      %p77 = scmp.eq.s32.totalorder %s18, 1
      %p78 = por %p76, %p77
      %p79 = scmp.ne.s32.totalorder %s70, %s71
      %p80 = scmp.eq.s32.totalorder %s18, 0
      %p81 = por %p79, %p80
      %p82 = scmp.ne.s32.totalorder %s70, %s71
      %p83 = scmp.eq.s32.totalorder %s19, 1
      %p84 = por %p82, %p83
      %p86 = scmp.ne.s32.totalorder %s71, %s85
      %p87 = scmp.eq.s32.totalorder %s19, 0
      %p88 = por %p86, %p87
      %s90 = sadd.s32 %s89, 1
      %p93 = scmp.eq.s32.totalorder %s13, 1
      %p94 = scmp.ne.s32.totalorder %s89, %s91
      %p95 = scmp.eq.s32.totalorder %s13, 0
      %p96 = por %p94, %p95
      %p97 = scmp.ne.s32.totalorder %s89, %s91
      %p98 = scmp.eq.s32.totalorder %s18, 1
      %p99 = por %p97, %p98
      %p100 = scmp.ne.s32.totalorder %s91, %s92
      %p101 = scmp.eq.s32.totalorder %s18, 0
      %p102 = por %p100, %p101
      %p103 = scmp.ne.s32.totalorder %s91, %s92
      %p104 = scmp.eq.s32.totalorder %s19, 1
      %p105 = por %p103, %p104
      %p107 = scmp.ne.s32.totalorder %s92, %s106
      %p108 = scmp.eq.s32.totalorder %s19, 0
      %p109 = por %p107, %p108
      %s110 = ssub.s32 %s13, %s20
      %p111 = scmp.eq.s32.totalorder %s110, 0
      %s113 = sadd.s32 %s112, 1
      %s114 = scalar_select %p111, %s112, %s113
      %p117 = pneg %p111
      %p118 = scmp.eq.s32.totalorder %s13, 1
      %p119 = por %p117, %p118
      %p120 = scmp.ne.s32.totalorder %s112, %s115
      %p121 = scmp.eq.s32.totalorder %s13, 0
      %p122 = por %p120, %p121
      %p123 = scmp.ne.s32.totalorder %s112, %s115
      %p124 = scmp.eq.s32.totalorder %s18, 1
      %p125 = por %p123, %p124
      %p126 = scmp.ne.s32.totalorder %s115, %s116
      %p127 = scmp.eq.s32.totalorder %s18, 0
      %p128 = por %p126, %p127
      %p129 = scmp.ne.s32.totalorder %s115, %s116
      %p130 = scmp.eq.s32.totalorder %s19, 1
      %p131 = por %p129, %p130
      %p133 = scmp.ne.s32.totalorder %s116, %s132
      %p134 = scmp.eq.s32.totalorder %s19, 0
      %p135 = por %p133, %p134
      %p136 = scmp.le.s32.totalorder 1, %s13
      %p137 = scmp.lt.s32.totalorder %s13, 3
      %p138 = pnand %p136, %p137
      %p139 = pneg %p138
      // Predicated region
      $region9: #{tpu_custom_call.1} parent=5 // pred_check
        _
      $region10: #{tpu_custom_call.1} parent=5 // pred_check_branch
        %141 = sbr.rel (%p138) target = $region12
      $region11: #{tpu_custom_call.1} parent=5 // pred_region
        %s142 = ssub.s32 %s13, 1
        // Predicated region
        $region13: #{tpu_custom_call.1} parent=11 // pred_check
          %p143 = pneg %p60
        $region14: #{tpu_custom_call.1} parent=11 // pred_check_branch
          %145 = sbr.rel (%p143) target = $region16
        $region15: #{tpu_custom_call.1} parent=11 // pred_region
          _
        $region16: #{tpu_custom_call.1} parent=11 // pred_fallthru
          _
        // Predicated region
        $region17: #{tpu_custom_call.1} parent=11 // pred_check
          %p146 = pneg %p81
        $region18: #{tpu_custom_call.1} parent=11 // pred_check_branch
          %148 = sbr.rel (%p146) target = $region20
        $region19: #{tpu_custom_call.1} parent=11 // pred_region
          _
        $region20: #{tpu_custom_call.1} parent=11 // pred_fallthru
          _
        // Predicated region
        $region21: #{tpu_custom_call.1} parent=11 // pred_check
          %p149 = pneg %p102
        $region22: #{tpu_custom_call.1} parent=11 // pred_check_branch
          %151 = sbr.rel (%p149) target = $region24
        $region23: #{tpu_custom_call.1} parent=11 // pred_region
          _
        $region24: #{tpu_custom_call.1} parent=11 // pred_fallthru
          _
      $region12: #{tpu_custom_call.1} parent=5 // pred_fallthru
        _
      %p152 = scmp.lt.s32.totalorder %s13, 2
      // Predicated region
      $region25: #{tpu_custom_call.1} parent=5 // pred_check
        %p153 = pneg %p152
      $region26: #{tpu_custom_call.1} parent=5 // pred_check_branch
        %155 = sbr.rel (%p153) target = $region28
      $region27: #{tpu_custom_call.1} parent=5 // pred_region
        // Predicated region
        $region29: #{tpu_custom_call.1} parent=27 // pred_check
          %p156 = pneg %p33
        $region30: #{tpu_custom_call.1} parent=27 // pred_check_branch
          %158 = sbr.rel (%p156) target = $region32
        $region31: #{tpu_custom_call.1} parent=27 // pred_region
          %p159 = scmp.lt.s32.totalorder %s13, 1
          %s160 = scalar_select %p159, %s13, 1
          %s161 = smul.addr %s160, 2
          %s162 = smul.addr %s161, 4
          %s163 = scalar_lea.vmem %s0, %s162
        $region32: #{tpu_custom_call.1} parent=27 // pred_fallthru
          _
      $region28: #{tpu_custom_call.1} parent=5 // pred_fallthru
        _
      %p164 = scmp.le.s32.totalorder 1, %s13
      %p165 = scmp.lt.s32.totalorder %s13, 3
      %p166 = pnand %p164, %p165
      %p167 = pneg %p166
      // Predicated region
      $region33: #{tpu_custom_call.1} parent=5 // pred_check
        _
      $region34: #{tpu_custom_call.1} parent=5 // pred_check_branch
        %169 = sbr.rel (%p166) target = $region36
      $region35: #{tpu_custom_call.1} parent=5 // pred_region
        %s170 = ssub.s32 %s13, 1
        %p171 = scmp.lt.s32.totalorder %s18, 1
        %s172 = scalar_select %p171, %s18, 1
        %s173 = smul.addr %s172, 2
        %s174 = smul.addr %s173, 4
        %s175 = scalar_lea.vmem %s0, %s174
        %p176 = pneg %p39
        %p177 = pneg %p36
        %p178 = pneg %p60
        %p179 = pneg %p57
        %p180 = pneg %p81
        %p181 = pneg %p78
        %p182 = pneg %p102
        %p183 = pneg %p99
        %p184 = pneg %p128
        %p185 = pneg %p125
        %s186 = sand.u32 %s115, 1
        %s187 = scalar_lea.sflag [#allocation5], %s186
        %s188 = sand.u32 %s115, 1
        %s189 = smul.addr %s188, 8
        %s190 = scalar_lea.vmem [#allocation4], %s189
        %p191 = scmp.lt.s32.totalorder %s18, 1
        %s192 = scalar_select %p191, %s18, 1
        %s193 = smul.addr %s192, 2
        %s194 = smul.addr %s193, 4
        %s195 = scalar_lea.vmem %s0, %s194
        %v196 = vld [vmem:[%s1] sm:$0xff]
        %v197 = vld [vmem:[%s1 + $0x8] sm:$0xff]
        %v198 = vld [vmem:[%s1 + $0x10] sm:$0xff]
        %v199 = vld [vmem:[%s1 + $0x18] sm:$0xff]
        %v200 = vld [vmem:[%s2] sm:$0xf]
        %v201 = vld [vmem:[%s3] sm:$0xf]
        %v202 = vld [vmem:[%s195] sm:$0xff]
        %v204 = vcombine.high %v202, %v202
        %vm205 = vcmask 31744
        %v207 = vsel %vm205, %v196, 0
        %v210 = vsel %vm205, %v197, 0
        %v213 = vsel %vm205, %v198, 0
        %v216 = vsel %vm205, %v199, 0
        %vm218 = vcmask 1043456
        %v219 = vsel %vm218, %v202, 0
        %v221 = vsel %vm218, %v204, 0
        %223 = vmatprep.subr.mxu0 %v221
        %224 = vmatpush1.msra.mxu0 %v219
        %225 = vmatprep.subr.mxu0 0.0
        %226 = vmatpush1.msra.mxu0 0.0
        %227 = vmatprep.subr.mxu0 0.0
        %228 = vmatpush1.msra.mxu0 0.0
        %229 = vmatprep.subr.mxu0 0.0
        %230 = vmatpush1.msra.mxu0 0.0
        %231 = vmatprep.subr.mxu0 0.0
        %232 = vmatpush1.msra.mxu0 0.0
        %233 = vmatprep.subr.mxu0 0.0
        %234 = vmatpush1.msra.mxu0 0.0
        %235 = vmatprep.subr.mxu0 0.0
        %236 = vmatpush1.msra.mxu0 0.0
        %237 = vmatprep.subr.mxu0 0.0
        %238 = vmatpush1.msra.mxu0 0.0
        %239 = vmatprep.subr.mxu0 0.0
        %240 = vmatpush1.msra.mxu0 0.0
        %241 = vmatprep.subr.mxu0 0.0
        %242 = vmatpush1.msra.mxu0 0.0
        %243 = vmatprep.subr.mxu0 0.0
        %244 = vmatpush1.msra.mxu0 0.0
        %245 = vmatprep.subr.mxu0 0.0
        %246 = vmatpush1.msra.mxu0 0.0
        %247 = vmatprep.subr.mxu0 0.0
        %248 = vmatpush1.msra.mxu0 0.0
        %249 = vmatprep.subr.mxu0 0.0
        %250 = vmatpush1.msra.mxu0 0.0
        %251 = vmatprep.subr.mxu0 0.0
        %252 = vmatpush1.msra.mxu0 0.0
        %253 = vmatprep.subr.mxu0 0.0
        %254 = vmatpush1.msra.mxu0 0.0
        %255 = vmatprep.subr.mxu0 0.0
        %256 = vmatpush1.msra.mxu0 0.0
        %257 = vmatprep.subr.mxu0 0.0
        %258 = vmatpush1.msra.mxu0 0.0
        %259 = vmatprep.subr.mxu0 0.0
        %260 = vmatpush1.msra.mxu0 0.0
        %261 = vmatprep.subr.mxu0 0.0
        %262 = vmatpush1.msra.mxu0 0.0
        %263 = vmatprep.subr.mxu0 0.0
        %264 = vmatpush1.msra.mxu0 0.0
        %265 = vmatprep.subr.mxu0 0.0
        %266 = vmatpush1.msra.mxu0 0.0
        %267 = vmatprep.subr.mxu0 0.0
        %268 = vmatpush1.msra.mxu0 0.0
        %269 = vmatprep.subr.mxu0 0.0
        %270 = vmatpush1.msra.mxu0 0.0
        %271 = vmatprep.subr.mxu0 0.0
        %272 = vmatpush1.msra.mxu0 0.0
        %273 = vmatprep.subr.mxu0 0.0
        %274 = vmatpush1.msra.mxu0 0.0
        %275 = vmatprep.subr.mxu0 0.0
        %276 = vmatpush1.msra.mxu0 0.0
        %277 = vmatprep.subr.mxu0 0.0
        %278 = vmatpush1.msra.mxu0 0.0
        %279 = vmatprep.subr.mxu0 0.0
        %280 = vmatpush1.msra.mxu0 0.0
        %281 = vmatprep.subr.mxu0 0.0
        %282 = vmatpush1.msra.mxu0 0.0
        %283 = vmatprep.subr.mxu0 0.0
        %284 = vmatpush1.msra.mxu0 0.0
        %285 = vmatprep.subr.mxu0 0.0
        %286 = vmatpush1.msra.mxu0 0.0
        %287 = vmatprep.mubr.f32.mxu0 0.0
        %288 = vmatmul.mubr.f32.gmra.mrb[0].mxu0 %v207
        %v289 = vpop.f32.mrb[0].mxu0
        %v290 = vadd.f32 0.0, %v289
        %v291 = vpop.f32.mrb[0].mxu0
        %v292 = vadd.f32 0.0, %v291
        %293 = vmatprep.mubr.f32.mxu0 0.0
        %294 = vmatmul.mubr.f32.gmra.mrb[0].mxu0 %v210
        %v295 = vpop.f32.mrb[0].mxu0
        %v296 = vadd.f32 0.0, %v295
        %v297 = vpop.f32.mrb[0].mxu0
        %v298 = vadd.f32 0.0, %v297
        %299 = vmatprep.mubr.f32.mxu0 0.0
        %300 = vmatmul.mubr.f32.gmra.mrb[0].mxu0 %v213
        %v301 = vpop.f32.mrb[0].mxu0
        %v302 = vadd.f32 0.0, %v301
        %v303 = vpop.f32.mrb[0].mxu0
        %v304 = vadd.f32 0.0, %v303
        %305 = vmatprep.mubr.f32.mxu0 0.0
        %306 = vmatmul.mubr.f32.gmra.mrb[0].mxu0 %v216
        %v307 = vpop.f32.mrb[0].mxu0
        %v308 = vadd.f32 0.0, %v307
        %v309 = vpop.f32.mrb[0].mxu0
        %v310 = vadd.f32 0.0, %v309
        %311 = vdwg.mxu0
        %v312 = vmax.f32 %v290, %v292
        %313 = vmax.xlane.f32.xlu0 %v312
        %v314 = vpop.xlane.xlu0 %313
        %v315 = vmax.f32 %v296, %v298
        %316 = vmax.xlane.f32.xlu0 %v315
        %v317 = vpop.xlane.xlu0 %316
        %v318 = vmax.f32 %v302, %v304
        %319 = vmax.xlane.f32.xlu0 %v318
        %v320 = vpop.xlane.xlu0 %319
        %v321 = vmax.f32 %v308, %v310
        %322 = vmax.xlane.f32.xlu0 %v321
        %v323 = vpop.xlane.xlu0 %322
        %v324 = vsub.f32 %v290, %v314
        %v325 = vsub.f32 %v292, %v314
        %v326 = vsub.f32 %v296, %v317
        %v327 = vsub.f32 %v298, %v317
        %v328 = vsub.f32 %v302, %v320
        %v329 = vsub.f32 %v304, %v320
        %v330 = vsub.f32 %v308, %v323
        %v331 = vsub.f32 %v310, %v323
        %v332 = vmul.f32 %v324, 1.442695
        %v333 = vpow.pop %v332
        %v334 = vmul.f32 %v325, 1.442695
        %v335 = vpow.pop %v334
        %v336 = vmul.f32 %v326, 1.442695
        %v337 = vpow.pop %v336
        %v338 = vmul.f32 %v327, 1.442695
        %v339 = vpow.pop %v338
        %v340 = vmul.f32 %v328, 1.442695
        %v341 = vpow.pop %v340
        %v342 = vmul.f32 %v329, 1.442695
        %v343 = vpow.pop %v342
        %v344 = vmul.f32 %v330, 1.442695
        %v345 = vpow.pop %v344
        %v346 = vmul.f32 %v331, 1.442695
        %v347 = vpow.pop %v346
        %v348 = vadd.f32 %v333, %v335
        %349 = vadd.xlane.f32.xlu0 %v348
        %v350 = vpop.xlane.xlu0 %349
        %v351 = vadd.f32 %v337, %v339
        %352 = vadd.xlane.f32.xlu0 %v351
        %v353 = vpop.xlane.xlu0 %352
        %v354 = vadd.f32 %v341, %v343
        %355 = vadd.xlane.f32.xlu0 %v354
        %v356 = vpop.xlane.xlu0 %355
        %v357 = vadd.f32 %v345, %v347
        %358 = vadd.xlane.f32.xlu0 %v357
        %v359 = vpop.xlane.xlu0 %358
        %v360 = vrcp.pop %v350
        %v361 = vrcp.pop %v353
        %v362 = vrcp.pop %v356
        %v363 = vrcp.pop %v359
        %v364 = vmul.f32 %v333, %v360
        %v365 = vmul.f32 %v335, %v360
        %v366 = vmul.f32 %v337, %v361
        %v367 = vmul.f32 %v339, %v361
        %v368 = vmul.f32 %v341, %v362
        %v369 = vmul.f32 %v343, %v362
        %v370 = vmul.f32 %v345, %v363
        %v371 = vmul.f32 %v347, %v363
        %v372 = vadd.f32 %v364, %v366
        %v373 = vadd.f32 %v372, %v368
        %v374 = vadd.f32 %v373, %v370
        %v375 = vrot.slane %v374, 4
        %v376 = vadd.f32 %v374, %v375
        %v377 = vrot.slane %v376, 2
        %v378 = vadd.f32 %v376, %v377
        %v379 = vrot.slane %v378, 1
        %v380 = vadd.f32 %v378, %v379
        %v381 = vadd.f32 %v365, %v367
        %v382 = vadd.f32 %v381, %v369
        %v383 = vadd.f32 %v382, %v371
        %v384 = vrot.slane %v383, 4
        %v385 = vadd.f32 %v383, %v384
        %v386 = vrot.slane %v385, 2
        %v387 = vadd.f32 %v385, %v386
        %v388 = vrot.slane %v387, 1
        %v389 = vadd.f32 %v387, %v388
        %v390 = vadd.f32 %v380, 1e-09
        %v391 = vadd.f32 %v389, 1e-09
        %v392 = vrcp.pop %v390
        %v393 = vrcp.pop %v391
        %v394 = vmul.f32 %v364, %v392
        %v395 = vmul.f32 %v365, %v393
        %v396 = vmul.f32 %v366, %v392
        %v397 = vmul.f32 %v367, %v393
        %v398 = vmul.f32 %v368, %v392
        %v399 = vmul.f32 %v369, %v393
        %v400 = vmul.f32 %v370, %v392
        %v401 = vmul.f32 %v371, %v393
        %403 = vset.pattern.permute.xlu0 0
        %404 = vperm.xlu0 %403, %v201
        %v405 = vpop.permute.xlu0 %404
        %vm407 = vcmask 261120
        %v409 = vsel %vm407, %v200, 0
        %411 = vmatprep.subr.mxu0 %v395
        %412 = vmatpush1.msra.mxu0 %v394
        %413 = vmatprep.subr.mxu0 %v397
        %414 = vmatpush1.msra.mxu0 %v396
        %415 = vmatprep.subr.mxu0 %v399
        %416 = vmatpush1.msra.mxu0 %v398
        %417 = vmatprep.subr.mxu0 %v401
        %418 = vmatpush1.msra.mxu0 %v400
        %419 = vmatprep.subr.mxu0 0.0
        %420 = vmatpush1.msra.mxu0 0.0
        %421 = vmatprep.subr.mxu0 0.0
        %422 = vmatpush1.msra.mxu0 0.0
        %423 = vmatprep.subr.mxu0 0.0
        %424 = vmatpush1.msra.mxu0 0.0
        %425 = vmatprep.subr.mxu0 0.0
        %426 = vmatpush1.msra.mxu0 0.0
        %427 = vmatprep.subr.mxu0 0.0
        %428 = vmatpush1.msra.mxu0 0.0
        %429 = vmatprep.subr.mxu0 0.0
        %430 = vmatpush1.msra.mxu0 0.0
        %431 = vmatprep.subr.mxu0 0.0
        %432 = vmatpush1.msra.mxu0 0.0
        %433 = vmatprep.subr.mxu0 0.0
        %434 = vmatpush1.msra.mxu0 0.0
        %435 = vmatprep.subr.mxu0 0.0
        %436 = vmatpush1.msra.mxu0 0.0
        %437 = vmatprep.subr.mxu0 0.0
        %438 = vmatpush1.msra.mxu0 0.0
        %439 = vmatprep.subr.mxu0 0.0
        %440 = vmatpush1.msra.mxu0 0.0
        %441 = vmatprep.subr.mxu0 0.0
        %442 = vmatpush1.msra.mxu0 0.0
        %443 = vmatprep.subr.mxu0 0.0
        %444 = vmatpush1.msra.mxu0 0.0
        %445 = vmatprep.subr.mxu0 0.0
        %446 = vmatpush1.msra.mxu0 0.0
        %447 = vmatprep.subr.mxu0 0.0
        %448 = vmatpush1.msra.mxu0 0.0
        %449 = vmatprep.subr.mxu0 0.0
        %450 = vmatpush1.msra.mxu0 0.0
        %451 = vmatprep.subr.mxu0 0.0
        %452 = vmatpush1.msra.mxu0 0.0
        %453 = vmatprep.subr.mxu0 0.0
        %454 = vmatpush1.msra.mxu0 0.0
        %455 = vmatprep.subr.mxu0 0.0
        %456 = vmatpush1.msra.mxu0 0.0
        %457 = vmatprep.subr.mxu0 0.0
        %458 = vmatpush1.msra.mxu0 0.0
        %459 = vmatprep.subr.mxu0 0.0
        %460 = vmatpush1.msra.mxu0 0.0
        %461 = vmatprep.subr.mxu0 0.0
        %462 = vmatpush1.msra.mxu0 0.0
        %463 = vmatprep.subr.mxu0 0.0
        %464 = vmatpush1.msra.mxu0 0.0
        %465 = vmatprep.subr.mxu0 0.0
        %466 = vmatpush1.msra.mxu0 0.0
        %467 = vmatprep.subr.mxu0 0.0
        %468 = vmatpush1.msra.mxu0 0.0
        %469 = vmatprep.subr.mxu0 0.0
        %470 = vmatpush1.msra.mxu0 0.0
        %471 = vmatprep.subr.mxu0 0.0
        %472 = vmatpush1.msra.mxu0 0.0
        %473 = vmatprep.subr.mxu0 0.0
        %474 = vmatpush1.msra.mxu0 0.0
        %475 = vmatprep.mubr.f32.mxu0 0.0
        %476 = vmatmul.mubr.f32.gmra.mrb[0].mxu0 %v409
        %v477 = vpop.f32.mrb[0].mxu0
        %v478 = vadd.f32 %v405, %v477
        %v479 = vpop.f32.mrb[0].mxu0
        %v480 = vadd.f32 %v405, %v479
        %481 = vdwg.mxu0
        %v484 = vcombine.low %v478, %v480
        %486 = vst [vmem:[%s190] sm:$0xff] %v484
        %s487 = sand.u32 %s115, 1
        %s488 = scalar_lea.sflag [#allocation5], %s487
        %s489 = sand.u32 %s115, 1
        %s490 = smul.addr %s489, 8
        %s491 = scalar_lea.vmem [#allocation4], %s490
        // Predicated region
        $region37: #{tpu_custom_call.1} parent=35 // pred_check
          %p492 = pneg %p125
        $region38: #{tpu_custom_call.1} parent=35 // pred_check_branch
          %494 = sbr.rel (%p492) target = $region40
        $region39: #{tpu_custom_call.1} parent=35 // pred_region
          %s496 = ssub.s32 128, 128
          %497 = vsyncadd %s488, %s496
          %s498 = smul.addr %s18, 2
          %s499 = smul.addr %s498, 64
          %s500 = scalar_lea.hbm %s4, %s499
          %s502 = sshll.u32 %s491, 4
          %s503 = int_to_ptr.vmem [resolvable:$true] %s502
          %505 = dma.vmem_to_hbm [thread:$0]  %s503, 128, %s500, %s488
        $region40: #{tpu_custom_call.1} parent=35 // pred_fallthru
          _
      $region36: #{tpu_custom_call.1} parent=5 // pred_fallthru
        _
      %p506 = scmp.le.s32.totalorder 2, %s13
      // Predicated region
      $region41: #{tpu_custom_call.1} parent=5 // pred_check
        %p507 = pneg %p506
      $region42: #{tpu_custom_call.1} parent=5 // pred_check_branch
        %509 = sbr.rel (%p507) target = $region44
      $region43: #{tpu_custom_call.1} parent=5 // pred_region
        %s510 = ssub.s32 %s13, 2
        // Predicated region
        $region45: #{tpu_custom_call.1} parent=43 // pred_check
          %p511 = pneg %p131
        $region46: #{tpu_custom_call.1} parent=43 // pred_check_branch
          %513 = sbr.rel (%p511) target = $region48
        $region47: #{tpu_custom_call.1} parent=43 // pred_region
          %s514 = sand.u32 %s116, 1
          %s515 = scalar_lea.sflag [#allocation5], %s514
          %s516 = sand.u32 %s116, 1
          %s517 = smul.addr %s516, 8
          %s518 = scalar_lea.vmem [#allocation4], %s517
          %519 = dma.done %s515, 128
        $region48: #{tpu_custom_call.1} parent=43 // pred_fallthru
          _
      $region44: #{tpu_custom_call.1} parent=5 // pred_fallthru
        _
    $region6: #{tpu_custom_call.1} parent=1 // loop_footer
      %s17 = sadd.s32 1, %s13
    $region7: #{tpu_custom_call.1} parent=1 // loop_footer_branch
      %12 = sbr.rel target = $region3
    $region8: #{tpu_custom_call.1} parent=1 // loop_exit
      _
    %520 = vsyncpa [#allocation5], 1
    %s521 = scalar_lea.sflag [#allocation5], 1
    %522 = vsyncpa %s521, 1

</llo_original>
